<compile_context>
chip_gen: v6e
topology: v6e:2x2x1
jax: 0.10.0
libtpu: 0.0.40
codegen_flags: <defaults>
</compile_context>

<pallas_src>
import functools

import jax
import jax.numpy as jnp
from jax import lax
from jax.experimental import pallas as pl
from jax.experimental.pallas import tpu as pltpu


def _pool_kernel(x_ref, aux_ref, o_ref, *, H, W, pad):
    """One block of (tile_planes, H*W): separable windowed sum via lane rolls."""
    HW = H * W
    x = x_ref[...].astype(jnp.float32)                 # (T, HW)
    invc = aux_ref[pl.ds(0, 1), :]                     # (1, HW) 1/valid-count

    # Windowed sum along W: lane rolls by +/- d, masked at the row borders.
    sw = x
    for d in range(1, pad + 1):
        b = 1 + 4 * (d - 1)
        m_left = aux_ref[pl.ds(b, 1), :]               # col >= d
        m_right = aux_ref[pl.ds(b + 1, 1), :]          # col <  W - d
        sw = sw + pltpu.roll(x, shift=d, axis=1) * m_left
        sw = sw + pltpu.roll(x, shift=(HW - d) % HW, axis=1) * m_right

    # Windowed sum along H: lane rolls by +/- d*W, masked at top/bottom rows.
    s = sw
    for d in range(1, pad + 1):
        b = 1 + 4 * (d - 1)
        m_up = aux_ref[pl.ds(b + 2, 1), :]             # row >= d
        m_down = aux_ref[pl.ds(b + 3, 1), :]           # row <  H - d
        s = s + pltpu.roll(sw, shift=(d * W) % HW, axis=1) * m_up
        s = s + pltpu.roll(sw, shift=(HW - d * W) % HW, axis=1) * m_down

    # avg-pool (count_include_pad=False) minus identity.
    o_ref[...] = (s * invc - x).astype(o_ref.dtype)


def _aux_maps(H, W, pad):
    """Row 0: reciprocal valid-tap count; rows 1..4*pad: border masks (f32)."""
    row = jnp.arange(H)
    colv = jnp.arange(W)
    rc = (jnp.minimum(row + pad, H - 1) - jnp.maximum(row - pad, 0) + 1)
    cc = (jnp.minimum(colv + pad, W - 1) - jnp.maximum(colv - pad, 0) + 1)
    cnt = (rc[:, None] * cc[None, :]).astype(jnp.float32)
    rows = [(1.0 / cnt).reshape(1, H * W)]

    col = jnp.tile(colv, H).reshape(1, H * W)          # flat -> column index
    flat = jnp.arange(H * W).reshape(1, H * W)         # flat index (row*W+col)
    for d in range(1, pad + 1):
        rows.append((col >= d).astype(jnp.float32))            # left tap valid
        rows.append((col < W - d).astype(jnp.float32))         # right tap valid
        rows.append((flat >= d * W).astype(jnp.float32))       # up tap valid
        rows.append((flat < (H - d) * W).astype(jnp.float32))  # down tap valid
    return jnp.concatenate(rows, axis=0)               # (1 + 4*pad, H*W)


def _tpu_budgets():
    """(target streamed-input bytes per grid step, vmem_limit_bytes)."""
    try:
        vmem_cap = int(pltpu.get_tpu_info().vmem_capacity_bytes)
    except Exception:
        vmem_cap = None
    if vmem_cap is None:
        return 2 * 1024 * 1024, 32 * 1024 * 1024       # safe everywhere
    if vmem_cap <= 96 * 1024 * 1024:                   # v7x-class: 64 MiB VMEM
        return 2 * 1024 * 1024, 44 * 1024 * 1024
    return 4 * 1024 * 1024, 64 * 1024 * 1024           # v5e / v6e: 128 MiB VMEM


def _pick_tile(N, plane_bytes, target_bytes):
    """tile_planes (divisor of N, mult-of-8 or full dim) and N padding (fallback)."""
    max_t = max(1, int(target_bytes) // max(int(plane_bytes), 1))
    if N <= max_t:
        # Whole thing fits one target-sized block; split in two if clean, so the
        # single "parallel" axis can still shard across 2 TensorCores on v7x.
        if N >= 16 and N % 16 == 0:
            return N // 2, 0
        return N, 0
    # Largest multiple-of-8 divisor of N that fits the target block size.
    best = 0
    t = 8
    while t <= max_t:
        if N % t == 0:
            best = t
        t += 8
    if best:
        return best, 0
    # Fallback (rare): pad N up to a multiple-of-8 tile.
    t = max(8, (max_t // 8) * 8)
    return t, (-N) % t


def pooling_pallas(x, *, pool_size=3, tile_planes=None):
    """x: [B, C, H, W] -> AvgPool2d(pool, 1, pool//2, count_include_pad=False)(x) - x."""
    assert pool_size % 2 == 1, "only odd pool_size supported (module default is 3)"
    B, C, H, W = x.shape
    N = B * C
    HW = H * W
    pad = pool_size // 2

    xf = x.reshape(N, HW)                              # free reshape (contiguous)
    aux = _aux_maps(H, W, pad)

    target_bytes, vmem_limit = _tpu_budgets()
    plane_bytes = HW * x.dtype.itemsize
    if tile_planes is None:
        tile_planes, pad_n = _pick_tile(N, plane_bytes, target_bytes)
    else:
        pad_n = (-N) % tile_planes
    if pad_n:
        xf = jnp.pad(xf, ((0, pad_n), (0, 0)))
    Np = xf.shape[0]

    elems = Np * HW
    cost = pl.CostEstimate(
        flops=elems * (8 * pad + 3),
        transcendentals=0,
        bytes_accessed=2 * elems * x.dtype.itemsize + int(aux.size) * 4,
    )

    out = pl.pallas_call(
        functools.partial(_pool_kernel, H=H, W=W, pad=pad),
        out_shape=jax.ShapeDtypeStruct((Np, HW), x.dtype),
        grid_spec=pltpu.PrefetchScalarGridSpec(
            num_scalar_prefetch=0,
            grid=(Np // tile_planes,),
            in_specs=[
                pl.BlockSpec((tile_planes, HW), lambda i: (i, 0)),
                pl.BlockSpec((1 + 4 * pad, HW), lambda i: (0, 0)),
            ],
            out_specs=pl.BlockSpec((tile_planes, HW), lambda i: (i, 0)),
        ),
        compiler_params=pltpu.CompilerParams(
            dimension_semantics=("parallel",),
            vmem_limit_bytes=vmem_limit,
        ),
        cost_estimate=cost,
    )(xf, aux)

    if pad_n:
        out = out[:N]
    return out.reshape(B, C, H, W)


def reference_pooling(x, pool_size=3):
    """Pure-JAX reference: avg pool (count_include_pad=False) minus identity."""
    pad = pool_size // 2
    win = (1, 1, pool_size, pool_size)
    strides = (1, 1, 1, 1)
    padding = ((0, 0), (0, 0), (pad, pad), (pad, pad))
    init = jnp.zeros((), x.dtype)
    s = lax.reduce_window(x, init, lax.add, win, strides, padding)
    cnt = lax.reduce_window(jnp.ones_like(x), init, lax.add, win, strides, padding)
    return s / cnt - x


if __name__ == "__main__":
    # Small shapes consistent with the module: B=2, C=4, H=W=16, pool_size=3.
    B, C, H, W = 2, 4, 16, 16
    key = jax.random.PRNGKey(0)
    x = jax.random.normal(key, (B, C, H, W), jnp.float32)

    y = pooling_pallas(x, pool_size=3)
    y = jax.block_until_ready(y)

    y_ref = reference_pooling(x, pool_size=3)
    assert y.shape == (B, C, H, W), y.shape
    assert jnp.allclose(y, y_ref, atol=1e-5, rtol=1e-5), float(
        jnp.max(jnp.abs(y - y_ref))
    )
    print("KERNEL_OK")
</pallas_src>

<mosaic_0001>
module attributes {stable_mosaic.version = 11 : i64} {
  func.func @_pool_kernel(%arg0: i32, %arg1: memref<8x256xf32, #tpu.memory_space<vmem>>, %arg2: memref<5x256xf32, #tpu.memory_space<vmem>>, %arg3: memref<8x256xf32, #tpu.memory_space<vmem>>) attributes {dimension_semantics = [#tpu.dimension_semantics<parallel>], iteration_bounds = array<i64: 1>, scalar_prefetch = 0 : i64, scratch_operands = 0 : i64, tpu.core_type = #tpu.core_type<tc>, window_params = [{transform_indices = @transform_0, window_bounds = array<i64: 8, 256>}, {pipeline_mode = #tpu.pipeline_mode<synchronous>, transform_indices = @transform_1, window_bounds = array<i64: 5, 256>}, {transform_indices = @transform_2, window_bounds = array<i64: 8, 256>}]} {
    %c0 = arith.constant 0 : index
    %c0_0 = arith.constant 0 : index
    %0 = vector.load %arg1[%c0, %c0_0] : memref<8x256xf32, #tpu.memory_space<vmem>>, vector<8x256xf32>
    %c0_1 = arith.constant 0 : index
    %c0_2 = arith.constant 0 : index
    %1 = vector.load %arg2[%c0_1, %c0_2] : memref<5x256xf32, #tpu.memory_space<vmem>>, vector<1x256xf32>
    %c1 = arith.constant 1 : index
    %c0_3 = arith.constant 0 : index
    %2 = vector.load %arg2[%c1, %c0_3] : memref<5x256xf32, #tpu.memory_space<vmem>>, vector<1x256xf32>
    %c2 = arith.constant 2 : index
    %c0_4 = arith.constant 0 : index
    %3 = vector.load %arg2[%c2, %c0_4] : memref<5x256xf32, #tpu.memory_space<vmem>>, vector<1x256xf32>
    %c1_i32 = arith.constant 1 : i32
    %4 = tpu.dynamic_rotate %0 by %c1_i32 dim 1 : vector<8x256xf32>, i32 -> vector<8x256xf32>
    %5 = vector.broadcast %2 : vector<1x256xf32> to vector<8x256xf32>
    %6 = arith.mulf %4, %5 : vector<8x256xf32>
    %7 = arith.addf %0, %6 : vector<8x256xf32>
    %c255_i32 = arith.constant 255 : i32
    %8 = tpu.dynamic_rotate %0 by %c255_i32 dim 1 : vector<8x256xf32>, i32 -> vector<8x256xf32>
    %9 = vector.broadcast %3 : vector<1x256xf32> to vector<8x256xf32>
    %10 = arith.mulf %8, %9 : vector<8x256xf32>
    %11 = arith.addf %7, %10 : vector<8x256xf32>
    %c3 = arith.constant 3 : index
    %c0_5 = arith.constant 0 : index
    %12 = vector.load %arg2[%c3, %c0_5] : memref<5x256xf32, #tpu.memory_space<vmem>>, vector<1x256xf32>
    %c4 = arith.constant 4 : index
    %c0_6 = arith.constant 0 : index
    %13 = vector.load %arg2[%c4, %c0_6] : memref<5x256xf32, #tpu.memory_space<vmem>>, vector<1x256xf32>
    %c16_i32 = arith.constant 16 : i32
    %14 = tpu.dynamic_rotate %11 by %c16_i32 dim 1 : vector<8x256xf32>, i32 -> vector<8x256xf32>
    %15 = vector.broadcast %12 : vector<1x256xf32> to vector<8x256xf32>
    %16 = arith.mulf %14, %15 : vector<8x256xf32>
    %17 = arith.addf %11, %16 : vector<8x256xf32>
    %c240_i32 = arith.constant 240 : i32
    %18 = tpu.dynamic_rotate %11 by %c240_i32 dim 1 : vector<8x256xf32>, i32 -> vector<8x256xf32>
    %19 = vector.broadcast %13 : vector<1x256xf32> to vector<8x256xf32>
    %20 = arith.mulf %18, %19 : vector<8x256xf32>
    %21 = arith.addf %17, %20 : vector<8x256xf32>
    %22 = vector.broadcast %1 : vector<1x256xf32> to vector<8x256xf32>
    %23 = arith.mulf %21, %22 : vector<8x256xf32>
    %24 = arith.subf %23, %0 : vector<8x256xf32>
    %c0_7 = arith.constant 0 : index
    %c0_8 = arith.constant 0 : index
    %25 = vector.load %arg3[%c0_7, %c0_8] : memref<8x256xf32, #tpu.memory_space<vmem>>, vector<8x256xf32>
    tpu.vector_store %arg3[%c0_7, %c0_8], %24 {strides = array<i32>} : memref<8x256xf32, #tpu.memory_space<vmem>>, vector<8x256xf32>,
    return
  }
  func.func @transform_0(%arg0: i32) -> (i32, i32) {
    %c0_i32 = arith.constant 0 : i32
    %c0_i32_0 = arith.constant 0 : i32
    return %arg0, %c0_i32 : i32, i32
  }
  func.func @transform_1(%arg0: i32) -> (i32, i32) {
    %c0_i32 = arith.constant 0 : i32
    %c0_i32_0 = arith.constant 0 : i32
    %c0_i32_1 = arith.constant 0 : i32
    return %c0_i32, %c0_i32_0 : i32, i32
  }
  func.func @transform_2(%arg0: i32) -> (i32, i32) {
    %c0_i32 = arith.constant 0 : i32
    %c0_i32_0 = arith.constant 0 : i32
    return %arg0, %c0_i32 : i32, i32
  }
}

</mosaic_0001>

<llo_original>
// kernel: tpu_custom_call.1
$region0: #{tpu_custom_call.1}
  #allocation0 [shape = 'u32[]', space=smem, size = 0x4, offset = 0x4, fixed_abs, tag = 'smem constant byte address 0x4 - core index']
  #allocation1 [shape = 'u32[144,128]{1,0:T(1,128)}', space=vmem, size = 0x12000, scoped, tag = 'internal scratch']
  %s0 = inlined_call_operand.hbm [shape: f32[8,256], index: 0, kind: input, shape index: {}]
  %s1 = inlined_call_operand.hbm [shape: f32[5,256], index: 1, kind: input, shape index: {}]
  %s2 = inlined_call_operand.hbm [shape: f32[8,256], index: 2, kind: output, shape index: {}]
  %s3 = sld [smem:[#allocation0]]
  $region26: #{tpu_custom_call.1} parent=0
    _
  %s5 = ssub.s32 1, %s3
  %s6 = scalar_select 0, %s5, %s3
  $region1: #{tpu_custom_call.1} parent=0
    #allocation2 [shape = 'u8[8192]{0}', space=vmem, size = 0x2000, scoped, tag = 'input window, operand 0, single buffered']
    #allocation3 [shape = 's32[1]{0}', space=sflag, size = 0x4, scoped, tag = 'scoped memory for tpu_custom_call.1']
    #allocation4 [shape = 's32[1]{0}', space=sflag, size = 0x4, scoped, tag = 'scoped memory for tpu_custom_call.1']
    #allocation5 [shape = 'u8[8192]{0}', space=vmem, size = 0x2000, scoped, tag = 'input window, operand 1, single buffered']
    #allocation6 [shape = 's32[1]{0}', space=sflag, size = 0x4, scoped, tag = 'scoped memory for tpu_custom_call.1']
    #allocation7 [shape = 'u8[8192]{0}', space=vmem, size = 0x2000, scoped, tag = 'output window, operand 0, single buffered']
    %7 = vsyncpa [#allocation3], 0
    %8 = vsyncpa [#allocation6], 0
    %9 = vsyncpa [#allocation4], 0
    // Predicated region
    $region2: #{tpu_custom_call.1} parent=1 // pred_check
      _
    $region3: #{tpu_custom_call.1} parent=1 // pred_check_branch
      %11 = sbr.rel (0) target = $region5
    $region4: #{tpu_custom_call.1} parent=1 // pred_region
      %s13 = ssub.s32 256, 256
      %14 = vsyncadd [#allocation3], %s13
      %s16 = sshll.u32 [#allocation2], 4
      %s17 = int_to_ptr.vmem [resolvable:$true] %s16
      %19 = dma.hbm_to_vmem [thread:$0]  %s0, 256, %s17, [#allocation3]
    $region5: #{tpu_custom_call.1} parent=1 // pred_fallthru
      _
    // Predicated region
    $region6: #{tpu_custom_call.1} parent=1 // pred_check
      _
    $region7: #{tpu_custom_call.1} parent=1 // pred_check_branch
      %21 = sbr.rel (0) target = $region9
    $region8: #{tpu_custom_call.1} parent=1 // pred_region
      %s23 = ssub.s32 256, 256
      %24 = vsyncadd [#allocation6], %s23
      %s26 = sshll.u32 [#allocation5], 4
      %s27 = int_to_ptr.vmem [resolvable:$true] %s26
      %29 = dma.hbm_to_vmem [thread:$0]  %s1, 256, %s27, [#allocation6]
    $region9: #{tpu_custom_call.1} parent=1 // pred_fallthru
      _
    // Predicated region
    $region10: #{tpu_custom_call.1} parent=1 // pred_check
      _
    $region11: #{tpu_custom_call.1} parent=1 // pred_check_branch
      %31 = sbr.rel (0) target = $region13
    $region12: #{tpu_custom_call.1} parent=1 // pred_region
      %32 = dma.done [#allocation3], 256
    $region13: #{tpu_custom_call.1} parent=1 // pred_fallthru
      _
    // Predicated region
    $region14: #{tpu_custom_call.1} parent=1 // pred_check
      _
    $region15: #{tpu_custom_call.1} parent=1 // pred_check_branch
      %34 = sbr.rel (0) target = $region17
    $region16: #{tpu_custom_call.1} parent=1 // pred_region
      %35 = dma.done [#allocation6], 256
    $region17: #{tpu_custom_call.1} parent=1 // pred_fallthru
      _
    %v36 = vld [vmem:[#allocation2] sm:$0xff]
    %v37 = vld [vmem:[#allocation2 + $0x8] sm:$0xff]
    %v38 = vld [vmem:[#allocation5] ss:$8 sm:$0x3]
    %s39 = scalar_lea.vmem [#allocation5], 1
    %v40 = vld [vmem:[%s39] ss:$8 sm:$0x3]
    %s41 = scalar_lea.vmem [#allocation5], 2
    %v42 = vld [vmem:[%s41] ss:$8 sm:$0x3]
    %43 = vrot.lane.b32.xlu0 %v36, 1
    %v44 = vpop.permute.xlu0 %43
    %45 = vrot.lane.b32.xlu0 %v37, 1
    %v46 = vpop.permute.xlu0 %45
    %v47 = vlaneseq
    %v48 = vand.u32 %v47, 127
    %vm49 = vcmp.lt.s32.totalorder %v48, 1
    %v50 = vsel %vm49, %v44, %v46
    %v51 = vsel %vm49, %v46, %v44
    %v53 = vlaneseq
    %v54 = vshrl.u32 %v53, 7
    %v55 = vsub.s32 0, %v54
    %v56 = vrot.slane %v40, %v55
    %v57 = vlaneseq
    %v58 = vshrl.u32 %v57, 7
    %v59 = vsub.s32 1, %v58
    %v60 = vrot.slane %v40, %v59
    %v63 = vmul.f32 %v51, %v56
    %v64 = vmul.f32 %v50, %v60
    %v65 = vadd.f32 %v36, %v63
    %v66 = vadd.f32 %v37, %v64
    %67 = vrot.lane.b32.xlu0 %v36, 127
    %v68 = vpop.permute.xlu0 %67
    %69 = vrot.lane.b32.xlu0 %v37, 127
    %v70 = vpop.permute.xlu0 %69
    %vm71 = vcmp.lt.s32.totalorder %v48, 127
    %v72 = vsel %vm71, %v68, %v70
    %v73 = vsel %vm71, %v70, %v68
    %v75 = vlaneseq
    %v76 = vshrl.u32 %v75, 7
    %v77 = vsub.s32 0, %v76
    %v78 = vrot.slane %v42, %v77
    %v79 = vlaneseq
    %v80 = vshrl.u32 %v79, 7
    %v81 = vsub.s32 1, %v80
    %v82 = vrot.slane %v42, %v81
    %v85 = vmul.f32 %v72, %v78
    %v86 = vmul.f32 %v73, %v82
    %v87 = vadd.f32 %v65, %v85
    %v88 = vadd.f32 %v66, %v86
    %s89 = scalar_lea.vmem [#allocation5], 3
    %v90 = vld [vmem:[%s89] ss:$8 sm:$0x3]
    %s91 = scalar_lea.vmem [#allocation5], 4
    %v92 = vld [vmem:[%s91] ss:$8 sm:$0x3]
    %93 = vrot.lane.b32.xlu0 %v87, 16
    %v94 = vpop.permute.xlu0 %93
    %95 = vrot.lane.b32.xlu0 %v88, 16
    %v96 = vpop.permute.xlu0 %95
    %vm97 = vcmp.lt.s32.totalorder %v48, 16
    %v98 = vsel %vm97, %v94, %v96
    %v99 = vsel %vm97, %v96, %v94
    %v101 = vlaneseq
    %v102 = vshrl.u32 %v101, 7
    %v103 = vsub.s32 0, %v102
    %v104 = vrot.slane %v90, %v103
    %v105 = vlaneseq
    %v106 = vshrl.u32 %v105, 7
    %v107 = vsub.s32 1, %v106
    %v108 = vrot.slane %v90, %v107
    %v111 = vmul.f32 %v99, %v104
    %v112 = vmul.f32 %v98, %v108
    %v113 = vadd.f32 %v87, %v111
    %v114 = vadd.f32 %v88, %v112
    %115 = vrot.lane.b32.xlu0 %v87, 112
    %v116 = vpop.permute.xlu0 %115
    %117 = vrot.lane.b32.xlu0 %v88, 112
    %v118 = vpop.permute.xlu0 %117
    %vm119 = vcmp.lt.s32.totalorder %v48, 112
    %v120 = vsel %vm119, %v116, %v118
    %v121 = vsel %vm119, %v118, %v116
    %v123 = vlaneseq
    %v124 = vshrl.u32 %v123, 7
    %v125 = vsub.s32 0, %v124
    %v126 = vrot.slane %v92, %v125
    %v127 = vlaneseq
    %v128 = vshrl.u32 %v127, 7
    %v129 = vsub.s32 1, %v128
    %v130 = vrot.slane %v92, %v129
    %v133 = vmul.f32 %v120, %v126
    %v134 = vmul.f32 %v121, %v130
    %v135 = vadd.f32 %v113, %v133
    %v136 = vadd.f32 %v114, %v134
    %v138 = vlaneseq
    %v139 = vshrl.u32 %v138, 7
    %v140 = vsub.s32 0, %v139
    %v141 = vrot.slane %v38, %v140
    %v142 = vlaneseq
    %v143 = vshrl.u32 %v142, 7
    %v144 = vsub.s32 1, %v143
    %v145 = vrot.slane %v38, %v144
    %v148 = vmul.f32 %v135, %v141
    %v149 = vmul.f32 %v136, %v145
    %v150 = vsub.f32 %v148, %v36
    %v151 = vsub.f32 %v149, %v37
    %152 = vst [vmem:[#allocation7] sm:$0xff] %v150
    %153 = vst [vmem:[#allocation7 + $0x8] sm:$0xff] %v151
    // Predicated region
    $region18: #{tpu_custom_call.1} parent=1 // pred_check
      _
    $region19: #{tpu_custom_call.1} parent=1 // pred_check_branch
      %155 = sbr.rel (0) target = $region21
    $region20: #{tpu_custom_call.1} parent=1 // pred_region
      %s157 = ssub.s32 256, 256
      %158 = vsyncadd [#allocation4], %s157
      %s160 = sshll.u32 [#allocation7], 4
      %s161 = int_to_ptr.vmem [resolvable:$true] %s160
      %163 = dma.vmem_to_hbm [thread:$0]  %s161, 256, %s2, [#allocation4]
    $region21: #{tpu_custom_call.1} parent=1 // pred_fallthru
      _
    // Predicated region
    $region22: #{tpu_custom_call.1} parent=1 // pred_check
      _
    $region23: #{tpu_custom_call.1} parent=1 // pred_check_branch
      %165 = sbr.rel (0) target = $region25
    $region24: #{tpu_custom_call.1} parent=1 // pred_region
      %166 = dma.done [#allocation4], 256
    $region25: #{tpu_custom_call.1} parent=1 // pred_fallthru
      _
    %167 = vsyncpa [#allocation3], 1
    %168 = vsyncpa [#allocation6], 1
    %169 = vsyncpa [#allocation4], 1

</llo_original>
